<compile_context>
chip_gen: v7x
topology: tpu7x:2x2x1
jax: 0.10.0
libtpu: 0.0.40
codegen_flags: <defaults>
</compile_context>

<pallas_src>
import functools

import jax
import jax.numpy as jnp
from jax.experimental import pallas as pl
from jax.experimental.pallas import tpu as pltpu


def context_kernel(review_ref, w_lin_ref, b_lin_ref, w_codes_ref, out_ref):
    TB, S, IN = review_ref.shape
    OUT = w_lin_ref.shape[1]
    NC = w_codes_ref.shape[1]

    # (TB, S, IN) -> (TB*S, IN): leading-dim merge, layout-free when S % 8 == 0
    # (asserted in the wrapper).
    x = review_ref[...].reshape(TB * S, IN).astype(jnp.bfloat16)

    # Linear + bias + ReLU.  Weight is already (IN, OUT) bf16 (pre-transposed in
    # the wrapper): no in-kernel transpose; f32 MXU accumulation, f32 epilogue
    # on the VPU (v5e VPU/EUP have no bf16).
    rev = jnp.dot(x, w_lin_ref[...], preferred_element_type=jnp.float32)
    rev = jnp.maximum(rev + b_lin_ref[...], 0.0)                       # (TB*S, OUT) f32

    # Codes projection (no bias).  Single bf16 pack of rev, used only here; the
    # final contraction below stays in f32 on the VPU.
    # TODO(synk): if NC stays tiny at production sizes, move this N=NC matmul
    # off the MXU as well (per-channel lane reduce), or pad NC toward the MXU width.
    rev_bf = rev.astype(jnp.bfloat16)
    logits = jnp.dot(rev_bf, w_codes_ref[...],
                     preferred_element_type=jnp.float32)               # (TB*S, NC) f32

    # Softmax over the sequence axis, in f32, with an exact reciprocal (one
    # value per (batch, code), folded into the per-channel scale below).
    # TODO(synk): with NC << 128 the exp/max/sum run on mostly-padded vregs; an
    # S-on-lanes layout for the logits would cut the EUP/XLU waste further.
    logits = logits.reshape(TB, S, NC)
    m = jnp.max(logits, axis=1, keepdims=True)                         # (TB, 1, NC)
    e = jnp.exp(logits - m)                                            # (TB, S, NC)
    inv_denom = 1.0 / jnp.sum(e, axis=1, keepdims=True)                # (TB, 1, NC)

    # contexts[b, c, :] = inv_denom[b, c] * sum_s e[b, s, c] * rev[b, s, :]
    # NC is small, so this runs on the VPU (broadcast multiply) + XLU (sublane
    # reduce over S) instead of TB serialized K=S MXU matmuls.  Each channel is
    # written into its lane range of the dense (TB, NC*OUT) output block, so the
    # block's HBM writeback DMA is fully dense.
    rev3 = rev.reshape(TB, S, OUT)
    for c in range(NC):                                                # static unroll
        num_c = jnp.sum(e[:, :, c:c + 1] * rev3, axis=1)               # (TB, OUT)
        ctx_c = num_c * inv_denom[:, :, c]                             # (TB, OUT)
        out_ref[:, c * OUT:(c + 1) * OUT] = ctx_c.astype(out_ref.dtype)


# --------------------------------------------------------------------------- #
# VMEM model & batch-tile selection
# --------------------------------------------------------------------------- #

def _round_up(x, m):
    return (x + m - 1) // m * m


def _tile_bytes(shape, itemsize):
    """Lane/sublane-padded VMEM footprint of one tile of the given shape."""
    if len(shape) == 1:
        return _round_up(shape[0] * itemsize, 512)
    sub_tile = {4: 8, 2: 16, 1: 32}.get(itemsize, 8)
    lanes = _round_up(shape[-1], 128)
    subs = _round_up(shape[-2], sub_tile)
    lead = 1
    for d in shape[:-2]:
        lead *= d
    return lead * subs * lanes * itemsize


def _step_vmem_bytes(tb, S, IN, OUT, NC, out_itemsize):
    """Per-grid-step VMEM footprint: lane padding + double buffering + temps."""
    b = 0
    b += 2 * _tile_bytes((tb, S, IN), 4)                  # review tile (double-buffered)
    b += 2 * _tile_bytes((tb, NC * OUT), out_itemsize)    # output tile (double-buffered)
    b += _tile_bytes((IN, OUT), 2)                        # resident bf16 linear weight
    b += _tile_bytes((1, OUT), 4)                         # resident f32 bias
    b += _tile_bytes((OUT, NC), 2)                        # resident bf16 codes weight
    # In-kernel intermediates (counted generously).
    b += _tile_bytes((tb * S, IN), 2)                     # x (bf16)
    b += _tile_bytes((tb * S, OUT), 4)                    # rev (f32)
    b += _tile_bytes((tb * S, OUT), 2)                    # rev_bf
    b += 2 * _tile_bytes((tb, S, NC), 4)                  # logits + e
    b += _tile_bytes((tb, S, OUT), 4)                     # per-channel broadcast temp
    b += _tile_bytes((tb, NC * OUT), 4)                   # f32 ctx before store
    return b


def _chip_config():
    """Generation-aware per-step VMEM budget, scoped-VMEM limit, TC count."""
    kind = ""
    try:
        kind = jax.devices()[0].device_kind.lower()
    except Exception:
        pass
    if "v5 lite" in kind or "v5e" in kind or "v5lite" in kind:
        # 128 MiB physical but only 16 MiB default scoped limit -> raise it.
        return {"budget": 24 << 20, "vmem_limit": 64 << 20, "multi_tc": False}
    if "v6" in kind:
        # 128 MiB physical, lots of headroom -> largest budget.
        return {"budget": 48 << 20, "vmem_limit": 96 << 20, "multi_tc": False}
    if "v7" in kind:
        # 64 MiB physical per TensorCore, 2 TensorCores per chip.
        return {"budget": 20 << 20, "vmem_limit": 48 << 20, "multi_tc": True}
    # Unknown generation: conservative budget, keep the default scoped limit.
    return {"budget": 16 << 20, "vmem_limit": None, "multi_tc": False}


def _pick_tb(B, S, IN, OUT, NC, out_itemsize, budget, multi_tc):
    """Largest divisor of B that (a) keeps the (tb, NC*OUT) output block
    (8,128)-legal (tb % 8 == 0 or tb == B) and (b) fits the padded VMEM budget.
    On 2-TensorCore chips prefer an even number of grid steps (megacore)."""
    legal = [d for d in range(1, B + 1) if B % d == 0 and (d % 8 == 0 or d == B)]
    fitting = [d for d in legal
               if _step_vmem_bytes(d, S, IN, OUT, NC, out_itemsize) <= budget]
    if not fitting:
        fitting = [min(legal)]            # smallest legal tile; rely on vmem_limit
    tb = max(fitting)
    if multi_tc and (B // tb) % 2 == 1:
        even = [d for d in fitting if (B // d) % 2 == 0]
        if even:
            tb = max(even)                # even grid so both TensorCores get work
    return tb


# --------------------------------------------------------------------------- #
# Wrapper
# --------------------------------------------------------------------------- #

@functools.partial(jax.jit, static_argnames=("tb", "out_dtype"))
def context_forward(review, w_lin, b_lin, w_codes, *, tb=None, out_dtype=jnp.float32):
    B, S, IN = review.shape
    OUT = w_lin.shape[0]
    NC = w_codes.shape[0]
    assert w_lin.shape == (OUT, IN) and w_codes.shape == (NC, OUT)
    # The in-kernel (TB, S) -> TB*S row merge is only layout-free when S % 8 == 0.
    # TODO(synk): pad S to a multiple of 8 (with softmax masking) for general S.
    assert S % 8 == 0, f"S={S} must be a multiple of 8"

    cfg = _chip_config()
    out_itemsize = jnp.dtype(out_dtype).itemsize
    if tb is None:
        tb = _pick_tb(B, S, IN, OUT, NC, out_itemsize, cfg["budget"], cfg["multi_tc"])
    assert B % tb == 0, (B, tb)
    grid = (B // tb,)

    # Pre-transpose once in the wrapper (free, in HBM) and feed bf16 MXU operands.
    # TODO(synk): for production IN/OUT, zero-pad the weights to 128/256-multiples
    # here to raise MXU utilization.
    w_lin_t = w_lin.T.astype(jnp.bfloat16)          # (IN, OUT)
    w_codes_t = w_codes.T.astype(jnp.bfloat16)      # (OUT, NC)
    b_lin_f32 = b_lin.reshape(1, OUT).astype(jnp.float32)

    cost = pl.CostEstimate(
        flops=2 * B * S * (IN * OUT + 2 * NC * OUT),
        transcendentals=B * S * NC,
        bytes_accessed=(B * S * IN * 4              # review (f32)
                        + IN * OUT * 2              # linear weight (bf16)
                        + OUT * 4                   # bias (f32)
                        + OUT * NC * 2              # codes weight (bf16)
                        + B * NC * OUT * out_itemsize),  # output
    )

    compiler_kwargs = dict(dimension_semantics=("parallel",))
    if cfg["vmem_limit"] is not None:
        compiler_kwargs["vmem_limit_bytes"] = cfg["vmem_limit"]

    out_flat = pl.pallas_call(
        context_kernel,
        out_shape=jax.ShapeDtypeStruct((B, NC * OUT), out_dtype),
        grid=grid,
        in_specs=[
            # Pipelined per-step review tile.
            pl.BlockSpec((tb, S, IN), lambda b: (b, 0, 0)),
            # Grid-invariant operands: whole-array resident in VMEM (single copy,
            # no per-step DMA, no double buffering).
            pl.BlockSpec(memory_space=pltpu.MemorySpace.VMEM),   # linear weight
            pl.BlockSpec(memory_space=pltpu.MemorySpace.VMEM),   # linear bias
            pl.BlockSpec(memory_space=pltpu.MemorySpace.VMEM),   # codes weight
        ],
        # Lane-dense output block (last dim NC*OUT); reshaped back in HBM below.
        out_specs=pl.BlockSpec((tb, NC * OUT), lambda b: (b, 0)),
        compiler_params=pltpu.CompilerParams(**compiler_kwargs),
        cost_estimate=cost,
    )(review, w_lin_t, b_lin_f32, w_codes_t)

    # Free reshape in HBM back to the module's (B, NC, OUT) layout.
    return out_flat.reshape(B, NC, OUT)


def context_reference(review, w_lin, b_lin, w_codes):
    # Pure-JAX f32 reference matching the PyTorch module exactly.
    rev = jnp.maximum(jnp.einsum("bsi,oi->bso", review, w_lin) + b_lin.reshape(-1), 0.0)
    logits = jnp.einsum("bso,co->bsc", rev, w_codes)
    wts = jax.nn.softmax(logits, axis=1)
    return jnp.einsum("bsc,bso->bco", wts, rev)


if __name__ == "__main__":
    B, S, IN, OUT, NC = 4, 8, 32, 32, 4

    key = jax.random.PRNGKey(0)
    k_rev, k_w1, k_b1, k_wc = jax.random.split(key, 4)

    # Deterministic, xavier-normal-style parameter init (matches init_weights()).
    std_lin = (2.0 / (IN + OUT)) ** 0.5
    std_codes = (2.0 / (OUT + NC)) ** 0.5
    w_lin = jax.random.normal(k_w1, (OUT, IN), jnp.float32) * std_lin     # nn.Linear layout
    b_lin = jax.random.normal(k_b1, (1, OUT), jnp.float32) * 0.01
    w_codes = jax.random.normal(k_wc, (NC, OUT), jnp.float32) * std_codes

    review = jax.random.normal(k_rev, (B, S, IN), jnp.float32)

    out = context_forward(review, w_lin, b_lin, w_codes)
    out = jax.block_until_ready(out)

    ref = context_reference(review, w_lin, b_lin, w_codes)
    assert out.shape == (B, NC, OUT)
    # bf16 MXU operands -> compare against the f32 reference at bf16-level tolerance
    # (exact softmax reciprocal and f32 final contraction keep this tight).
    err = float(jnp.max(jnp.abs(out - ref)))
    assert jnp.allclose(out, ref, atol=3e-2, rtol=3e-2), err

    print("KERNEL_OK")
</pallas_src>

<mosaic_0001>
module attributes {stable_mosaic.version = 11 : i64} {
  func.func @context_kernel(%arg0: i32, %arg1: memref<4x8x32xf32, #tpu.memory_space<vmem>>, %arg2: memref<32x32xbf16, #tpu.memory_space<vmem>>, %arg3: memref<1x32xf32, #tpu.memory_space<vmem>>, %arg4: memref<32x4xbf16, #tpu.memory_space<vmem>>, %arg5: memref<4x128xf32, #tpu.memory_space<vmem>>) attributes {dimension_semantics = [#tpu.dimension_semantics<parallel>], iteration_bounds = array<i64: 1>, scalar_prefetch = 0 : i64, scratch_operands = 0 : i64, tpu.core_type = #tpu.core_type<tc>, window_params = [{transform_indices = @transform_0, window_bounds = array<i64: 4, 8, 32>}, {pipeline_mode = #tpu.pipeline_mode<synchronous>, transform_indices = @transform_1, window_bounds = array<i64: 32, 32>}, {pipeline_mode = #tpu.pipeline_mode<synchronous>, transform_indices = @transform_2, window_bounds = array<i64: 1, 32>}, {pipeline_mode = #tpu.pipeline_mode<synchronous>, transform_indices = @transform_3, window_bounds = array<i64: 32, 4>}, {transform_indices = @transform_4, window_bounds = array<i64: 4, 128>}]} {
    %c0 = arith.constant 0 : index
    %c0_0 = arith.constant 0 : index
    %c0_1 = arith.constant 0 : index
    %0 = vector.load %arg1[%c0, %c0_0, %c0_1] : memref<4x8x32xf32, #tpu.memory_space<vmem>>, vector<4x8x32xf32>
    %1 = vector.shape_cast %0 : vector<4x8x32xf32> to vector<32x32xf32>
    %2 = arith.truncf %1 : vector<32x32xf32> to vector<32x32xbf16>
    %c0_2 = arith.constant 0 : index
    %c0_3 = arith.constant 0 : index
    %3 = vector.load %arg2[%c0_2, %c0_3] : memref<32x32xbf16, #tpu.memory_space<vmem>>, vector<32x32xbf16>
    %cst = arith.constant dense<0.000000e+00> : vector<32x32xf32>
    %4 = tpu.matmul %2, %3, %cst {dimension_numbers = #tpu.dot_dimension_numbers<[1], [0], [0], [1], [0, 0, 1, 1], [], []>} : vector<32x32xbf16>, vector<32x32xbf16>, vector<32x32xf32> -> vector<32x32xf32>
    %c0_4 = arith.constant 0 : index
    %c0_5 = arith.constant 0 : index
    %5 = vector.load %arg3[%c0_4, %c0_5] : memref<1x32xf32, #tpu.memory_space<vmem>>, vector<1x32xf32>
    %6 = vector.broadcast %5 : vector<1x32xf32> to vector<32x32xf32>
    %7 = arith.addf %4, %6 : vector<32x32xf32>
    %cst_6 = arith.constant 0.000000e+00 : f32
    %8 = vector.broadcast %cst_6 : f32 to vector<32x32xf32>
    %9 = arith.maximumf %7, %8 : vector<32x32xf32>
    %10 = arith.truncf %9 : vector<32x32xf32> to vector<32x32xbf16>
    %c0_7 = arith.constant 0 : index
    %c0_8 = arith.constant 0 : index
    %11 = vector.load %arg4[%c0_7, %c0_8] : memref<32x4xbf16, #tpu.memory_space<vmem>>, vector<32x4xbf16>
    %cst_9 = arith.constant dense<0.000000e+00> : vector<32x4xf32>
    %12 = tpu.matmul %10, %11, %cst_9 {dimension_numbers = #tpu.dot_dimension_numbers<[1], [0], [0], [1], [0, 0, 1, 1], [], []>} : vector<32x32xbf16>, vector<32x4xbf16>, vector<32x4xf32> -> vector<32x4xf32>
    %13 = vector.shape_cast %12 : vector<32x4xf32> to vector<4x8x4xf32>
    %cst_10 = arith.constant dense<0xFF800000> : vector<4x4xf32>
    %14 = vector.multi_reduction <maximumf>, %13, %cst_10 [1] : vector<4x8x4xf32> to vector<4x4xf32>
    %15 = vector.shape_cast %14 : vector<4x4xf32> to vector<4x1x4xf32>
    %16 = vector.broadcast %15 : vector<4x1x4xf32> to vector<4x8x4xf32>
    %17 = arith.subf %13, %16 : vector<4x8x4xf32>
    %18 = math.exp %17 : vector<4x8x4xf32>
    %cst_11 = arith.constant dense<0.000000e+00> : vector<4x4xf32>
    %19 = vector.multi_reduction <add>, %18, %cst_11 [1] : vector<4x8x4xf32> to vector<4x4xf32>
    %20 = vector.shape_cast %19 : vector<4x4xf32> to vector<4x1x4xf32>
    %cst_12 = arith.constant 1.000000e+00 : f32
    %21 = vector.broadcast %cst_12 : f32 to vector<4x1x4xf32>
    %22 = arith.divf %21, %20 : vector<4x1x4xf32>
    %23 = vector.shape_cast %9 : vector<32x32xf32> to vector<4x8x32xf32>
    %24 = vector.extract_strided_slice %18 {offsets = [0, 0, 0], sizes = [4, 8, 1], strides = [1, 1, 1]} : vector<4x8x4xf32> to vector<4x8x1xf32>
    %25 = vector.broadcast %24 : vector<4x8x1xf32> to vector<4x8x32xf32>
    %26 = arith.mulf %25, %23 : vector<4x8x32xf32>
    %cst_13 = arith.constant dense<0.000000e+00> : vector<4x32xf32>
    %27 = vector.multi_reduction <add>, %26, %cst_13 [1] : vector<4x8x32xf32> to vector<4x32xf32>
    %28 = vector.extract_strided_slice %22 {offsets = [0, 0, 0], sizes = [4, 1, 1], strides = [1, 1, 1]} : vector<4x1x4xf32> to vector<4x1x1xf32>
    %29 = vector.shape_cast %28 : vector<4x1x1xf32> to vector<4x1xf32>
    %30 = vector.broadcast %29 : vector<4x1xf32> to vector<4x32xf32>
    %31 = arith.mulf %27, %30 : vector<4x32xf32>
    %c0_14 = arith.constant 0 : index
    %c0_15 = arith.constant 0 : index
    %32 = vector.load %arg5[%c0_14, %c0_15] : memref<4x128xf32, #tpu.memory_space<vmem>>, vector<4x32xf32>
    tpu.vector_store %arg5[%c0_14, %c0_15], %31 {strides = array<i32>} : memref<4x128xf32, #tpu.memory_space<vmem>>, vector<4x32xf32>,
    %33 = vector.extract_strided_slice %18 {offsets = [0, 0, 1], sizes = [4, 8, 1], strides = [1, 1, 1]} : vector<4x8x4xf32> to vector<4x8x1xf32>
    %34 = vector.broadcast %33 : vector<4x8x1xf32> to vector<4x8x32xf32>
    %35 = arith.mulf %34, %23 : vector<4x8x32xf32>
    %cst_16 = arith.constant dense<0.000000e+00> : vector<4x32xf32>
    %36 = vector.multi_reduction <add>, %35, %cst_16 [1] : vector<4x8x32xf32> to vector<4x32xf32>
    %37 = vector.extract_strided_slice %22 {offsets = [0, 0, 1], sizes = [4, 1, 1], strides = [1, 1, 1]} : vector<4x1x4xf32> to vector<4x1x1xf32>
    %38 = vector.shape_cast %37 : vector<4x1x1xf32> to vector<4x1xf32>
    %39 = vector.broadcast %38 : vector<4x1xf32> to vector<4x32xf32>
    %40 = arith.mulf %36, %39 : vector<4x32xf32>
    %c0_17 = arith.constant 0 : index
    %c32 = arith.constant 32 : index
    %41 = vector.load %arg5[%c0_17, %c32] : memref<4x128xf32, #tpu.memory_space<vmem>>, vector<4x32xf32>
    tpu.vector_store %arg5[%c0_17, %c32], %40 {strides = array<i32>} : memref<4x128xf32, #tpu.memory_space<vmem>>, vector<4x32xf32>,
    %42 = vector.extract_strided_slice %18 {offsets = [0, 0, 2], sizes = [4, 8, 1], strides = [1, 1, 1]} : vector<4x8x4xf32> to vector<4x8x1xf32>
    %43 = vector.broadcast %42 : vector<4x8x1xf32> to vector<4x8x32xf32>
    %44 = arith.mulf %43, %23 : vector<4x8x32xf32>
    %cst_18 = arith.constant dense<0.000000e+00> : vector<4x32xf32>
    %45 = vector.multi_reduction <add>, %44, %cst_18 [1] : vector<4x8x32xf32> to vector<4x32xf32>
    %46 = vector.extract_strided_slice %22 {offsets = [0, 0, 2], sizes = [4, 1, 1], strides = [1, 1, 1]} : vector<4x1x4xf32> to vector<4x1x1xf32>
    %47 = vector.shape_cast %46 : vector<4x1x1xf32> to vector<4x1xf32>
    %48 = vector.broadcast %47 : vector<4x1xf32> to vector<4x32xf32>
    %49 = arith.mulf %45, %48 : vector<4x32xf32>
    %c0_19 = arith.constant 0 : index
    %c64 = arith.constant 64 : index
    %50 = vector.load %arg5[%c0_19, %c64] : memref<4x128xf32, #tpu.memory_space<vmem>>, vector<4x32xf32>
    tpu.vector_store %arg5[%c0_19, %c64], %49 {strides = array<i32>} : memref<4x128xf32, #tpu.memory_space<vmem>>, vector<4x32xf32>,
    %51 = vector.extract_strided_slice %18 {offsets = [0, 0, 3], sizes = [4, 8, 1], strides = [1, 1, 1]} : vector<4x8x4xf32> to vector<4x8x1xf32>
    %52 = vector.broadcast %51 : vector<4x8x1xf32> to vector<4x8x32xf32>
    %53 = arith.mulf %52, %23 : vector<4x8x32xf32>
    %cst_20 = arith.constant dense<0.000000e+00> : vector<4x32xf32>
    %54 = vector.multi_reduction <add>, %53, %cst_20 [1] : vector<4x8x32xf32> to vector<4x32xf32>
    %55 = vector.extract_strided_slice %22 {offsets = [0, 0, 3], sizes = [4, 1, 1], strides = [1, 1, 1]} : vector<4x1x4xf32> to vector<4x1x1xf32>
    %56 = vector.shape_cast %55 : vector<4x1x1xf32> to vector<4x1xf32>
    %57 = vector.broadcast %56 : vector<4x1xf32> to vector<4x32xf32>
    %58 = arith.mulf %54, %57 : vector<4x32xf32>
    %c0_21 = arith.constant 0 : index
    %c96 = arith.constant 96 : index
    %59 = vector.load %arg5[%c0_21, %c96] : memref<4x128xf32, #tpu.memory_space<vmem>>, vector<4x32xf32>
    tpu.vector_store %arg5[%c0_21, %c96], %58 {strides = array<i32>} : memref<4x128xf32, #tpu.memory_space<vmem>>, vector<4x32xf32>,
    return
  }
  func.func @transform_0(%arg0: i32) -> (i32, i32, i32) {
    %c0_i32 = arith.constant 0 : i32
    %c0_i32_0 = arith.constant 0 : i32
    %c0_i32_1 = arith.constant 0 : i32
    return %arg0, %c0_i32, %c0_i32_0 : i32, i32, i32
  }
  func.func @transform_1(%arg0: i32) -> (i32, i32) {
    %c0_i32 = arith.constant 0 : i32
    %c0_i32_0 = arith.constant 0 : i32
    %c0_i32_1 = arith.constant 0 : i32
    return %c0_i32, %c0_i32_0 : i32, i32
  }
  func.func @transform_2(%arg0: i32) -> (i32, i32) {
    %c0_i32 = arith.constant 0 : i32
    %c0_i32_0 = arith.constant 0 : i32
    %c0_i32_1 = arith.constant 0 : i32
    return %c0_i32, %c0_i32_0 : i32, i32
  }
  func.func @transform_3(%arg0: i32) -> (i32, i32) {
    %c0_i32 = arith.constant 0 : i32
    %c0_i32_0 = arith.constant 0 : i32
    %c0_i32_1 = arith.constant 0 : i32
    return %c0_i32, %c0_i32_0 : i32, i32
  }
  func.func @transform_4(%arg0: i32) -> (i32, i32) {
    %c0_i32 = arith.constant 0 : i32
    %c0_i32_0 = arith.constant 0 : i32
    return %arg0, %c0_i32 : i32, i32
  }
}

</mosaic_0001>

<llo_original>
// kernel: context_forward.1
$region0: #{context_forward.1}
  #allocation0 [shape = 'u32[]', space=smem, size = 0x4, offset = 0x4, fixed_abs, tag = 'smem constant byte address 0x4 - core index']
  #allocation1 [shape = 'u32[144,128]{1,0:T(1,128)}', space=vmem, size = 0x12000, scoped, tag = 'internal scratch']
  %s0 = inlined_call_operand.vmem [shape: f32[4,8,32], index: 0, kind: input, shape index: {}]
  %s1 = inlined_call_operand.vmem [shape: bf16[32,32], index: 1, kind: input, shape index: {}]
  %s2 = inlined_call_operand.vmem [shape: f32[1,32], index: 2, kind: input, shape index: {}]
  %s3 = inlined_call_operand.vmem [shape: bf16[32,4], index: 3, kind: input, shape index: {}]
  %s4 = inlined_call_operand.vmem [shape: f32[4,128], index: 4, kind: output, shape index: {}]
  %s5 = sld [smem:[#allocation0]]
  $region26: #{context_forward.1} parent=0
    _
  %s7 = ssub.s32 1, %s5
  %s8 = scalar_select 0, %s7, %s5
  // Predicated region
  $region2: #{context_forward.1} parent=0 // pred_check
    _
  $region3: #{context_forward.1} parent=0 // pred_check_branch
    %10 = sbr.rel (0) target = $region5
  $region4: #{context_forward.1} parent=0 // pred_region
    _
  $region5: #{context_forward.1} parent=0 // pred_fallthru
    _
  // Predicated region
  $region6: #{context_forward.1} parent=0 // pred_check
    _
  $region7: #{context_forward.1} parent=0 // pred_check_branch
    %12 = sbr.rel (0) target = $region9
  $region8: #{context_forward.1} parent=0 // pred_region
    _
  $region9: #{context_forward.1} parent=0 // pred_fallthru
    _
  // Predicated region
  $region10: #{context_forward.1} parent=0 // pred_check
    _
  $region11: #{context_forward.1} parent=0 // pred_check_branch
    %14 = sbr.rel (0) target = $region13
  $region12: #{context_forward.1} parent=0 // pred_region
    _
  $region13: #{context_forward.1} parent=0 // pred_fallthru
    _
  // Predicated region
  $region14: #{context_forward.1} parent=0 // pred_check
    _
  $region15: #{context_forward.1} parent=0 // pred_check_branch
    %16 = sbr.rel (0) target = $region17
  $region16: #{context_forward.1} parent=0 // pred_region
    _
  $region17: #{context_forward.1} parent=0 // pred_fallthru
    _
  %v18 = vld [vmem:[%s0] sm:$0xff]
  %v19 = vld [vmem:[%s0 + $0x8] sm:$0xff]
  %v20 = vld [vmem:[%s0 + $0x10] sm:$0xff]
  %v21 = vld [vmem:[%s0 + $0x18] sm:$0xff]
  %v22 = vpack.c.bf16 %v19, %v18
  %v23 = vpack.c.bf16 %v21, %v20
  %v24 = vld [vmem:[%s1] sm:$0xf]
  %v25 = vld [vmem:[%s1 + $0x4] sm:$0xf]
  %v26 = vld [vmem:[%s1 + $0x8] sm:$0xf]
  %v27 = vld [vmem:[%s1 + $0xc] sm:$0xf]
  %v28 = vld [vmem:[%s2] sm:$0x1]
  %v30 = vlaneseq
  %v31 = vshrl.u32 %v30, 7
  %v32 = vsub.s32 0, %v31
  %v33 = vrot.slane %v28, %v32
  %v39 = vunpack.c.l.b16 %v24
  %v40 = vunpack.c.l.b16 %v25
  %v41 = vunpack.c.l.b16 %v26
  %v42 = vunpack.c.l.b16 %v27
  %v43 = vpack.c.b16 %v40, %v39
  %v44 = vpack.c.b16 %v42, %v41
  %vm47 = vcmask 261120
  %v49 = vsel %vm47, %v22, 0
  %v52 = vsel %vm47, %v23, 0
  %54 = vmatprep.subr.bf16.mxu0 0
  %55 = vmatpush1.bf16.msra.mxu0 %v43
  %56 = vmatprep.subr.bf16.mxu0 0
  %57 = vmatpush1.bf16.msra.mxu0 %v44
  %58 = vmatprep.subr.bf16.mxu0 0
  %59 = vmatpush1.bf16.msra.mxu0 0
  %60 = vmatprep.subr.bf16.mxu0 0
  %61 = vmatpush1.bf16.msra.mxu0 0
  %62 = vmatprep.subr.bf16.mxu0 0
  %63 = vmatpush1.bf16.msra.mxu0 0
  %64 = vmatprep.subr.bf16.mxu0 0
  %65 = vmatpush1.bf16.msra.mxu0 0
  %66 = vmatprep.subr.bf16.mxu0 0
  %67 = vmatpush1.bf16.msra.mxu0 0
  %68 = vmatprep.subr.bf16.mxu0 0
  %69 = vmatpush1.bf16.msra.mxu0 0
  %70 = vmatprep.subr.bf16.mxu0 0
  %71 = vmatpush1.bf16.msra.mxu0 0
  %72 = vmatprep.subr.bf16.mxu0 0
  %73 = vmatpush1.bf16.msra.mxu0 0
  %74 = vmatprep.subr.bf16.mxu0 0
  %75 = vmatpush1.bf16.msra.mxu0 0
  %76 = vmatprep.subr.bf16.mxu0 0
  %77 = vmatpush1.bf16.msra.mxu0 0
  %78 = vmatprep.subr.bf16.mxu0 0
  %79 = vmatpush1.bf16.msra.mxu0 0
  %80 = vmatprep.subr.bf16.mxu0 0
  %81 = vmatpush1.bf16.msra.mxu0 0
  %82 = vmatprep.subr.bf16.mxu0 0
  %83 = vmatpush1.bf16.msra.mxu0 0
  %84 = vmatprep.subr.bf16.mxu0 0
  %85 = vmatpush1.bf16.msra.mxu0 0
  %86 = vmatprep.mubr.bf16.mxu0 0
  %87 = vmatmul.mubr.bf16.gmra.mrb[0].mxu0 %v49
  %v88 = vpop.f32.mrb[0].mxu0
  %v89 = vadd.f32 %v33, %v88
  %v90 = vpop.f32.mrb[0].mxu0
  %v91 = vpop.f32.mrb[0].mxu0
  %v92 = vadd.f32 %v33, %v91
  %v93 = vpop.f32.mrb[0].mxu0
  %94 = vmatprep.mubr.bf16.mxu0 0
  %95 = vmatmul.mubr.bf16.gmra.mrb[0].mxu0 %v52
  %v96 = vpop.f32.mrb[0].mxu0
  %v97 = vadd.f32 %v33, %v96
  %v98 = vpop.f32.mrb[0].mxu0
  %v99 = vpop.f32.mrb[0].mxu0
  %v100 = vadd.f32 %v33, %v99
  %v101 = vpop.f32.mrb[0].mxu0
  %102 = vdwg.mxu0
  %v103 = vmax.f32 %v89, 0.0
  %v104 = vmax.f32 %v92, 0.0
  %v105 = vmax.f32 %v97, 0.0
  %v106 = vmax.f32 %v100, 0.0
  %v107 = vpack.c.bf16 %v104, %v103
  %v108 = vpack.c.bf16 %v106, %v105
  %v109 = vld [vmem:[%s3] sm:$0xf]
  %v110 = vld [vmem:[%s3 + $0x4] sm:$0xf]
  %v111 = vld [vmem:[%s3 + $0x8] sm:$0xf]
  %v112 = vld [vmem:[%s3 + $0xc] sm:$0xf]
  %v117 = vunpack.c.l.b16 %v109
  %v118 = vunpack.c.l.b16 %v110
  %v119 = vunpack.c.l.b16 %v111
  %v120 = vunpack.c.l.b16 %v112
  %v121 = vpack.c.b16 %v118, %v117
  %v122 = vpack.c.b16 %v120, %v119
  %v126 = vsel %vm47, %v107, 0
  %v129 = vsel %vm47, %v108, 0
  %131 = vmatprep.subr.bf16.mxu0 0
  %132 = vmatpush1.bf16.msra.mxu0 %v121
  %133 = vmatprep.subr.bf16.mxu0 0
  %134 = vmatpush1.bf16.msra.mxu0 %v122
  %135 = vmatprep.subr.bf16.mxu0 0
  %136 = vmatpush1.bf16.msra.mxu0 0
  %137 = vmatprep.subr.bf16.mxu0 0
  %138 = vmatpush1.bf16.msra.mxu0 0
  %139 = vmatprep.subr.bf16.mxu0 0
  %140 = vmatpush1.bf16.msra.mxu0 0
  %141 = vmatprep.subr.bf16.mxu0 0
  %142 = vmatpush1.bf16.msra.mxu0 0
  %143 = vmatprep.subr.bf16.mxu0 0
  %144 = vmatpush1.bf16.msra.mxu0 0
  %145 = vmatprep.subr.bf16.mxu0 0
  %146 = vmatpush1.bf16.msra.mxu0 0
  %147 = vmatprep.subr.bf16.mxu0 0
  %148 = vmatpush1.bf16.msra.mxu0 0
  %149 = vmatprep.subr.bf16.mxu0 0
  %150 = vmatpush1.bf16.msra.mxu0 0
  %151 = vmatprep.subr.bf16.mxu0 0
  %152 = vmatpush1.bf16.msra.mxu0 0
  %153 = vmatprep.subr.bf16.mxu0 0
  %154 = vmatpush1.bf16.msra.mxu0 0
  %155 = vmatprep.subr.bf16.mxu0 0
  %156 = vmatpush1.bf16.msra.mxu0 0
  %157 = vmatprep.subr.bf16.mxu0 0
  %158 = vmatpush1.bf16.msra.mxu0 0
  %159 = vmatprep.subr.bf16.mxu0 0
  %160 = vmatpush1.bf16.msra.mxu0 0
  %161 = vmatprep.subr.bf16.mxu0 0
  %162 = vmatpush1.bf16.msra.mxu0 0
  %163 = vmatprep.mubr.bf16.mxu0 0
  %164 = vmatmul.mubr.bf16.gmra.mrb[0].mxu0 %v126
  %v165 = vpop.f32.mrb[0].mxu0
  %v166 = vadd.f32 0.0, %v165
  %v167 = vpop.f32.mrb[0].mxu0
  %v168 = vpop.f32.mrb[0].mxu0
  %v169 = vadd.f32 0.0, %v168
  %v170 = vpop.f32.mrb[0].mxu0
  %171 = vmatprep.mubr.bf16.mxu0 0
  %172 = vmatmul.mubr.bf16.gmra.mrb[0].mxu0 %v129
  %v173 = vpop.f32.mrb[0].mxu0
  %v174 = vadd.f32 0.0, %v173
  %v175 = vpop.f32.mrb[0].mxu0
  %v176 = vpop.f32.mrb[0].mxu0
  %v177 = vadd.f32 0.0, %v176
  %v178 = vpop.f32.mrb[0].mxu0
  %179 = vdwg.mxu0
  %vm180 = vcmask 31744
  %v181 = vsel %vm180, %v166, -inf
  %v182 = vrot.slane %v181, 4
  %v183 = vmax.f32 %v181, %v182
  %v184 = vrot.slane %v183, 2
  %v185 = vmax.f32 %v183, %v184
  %v186 = vrot.slane %v185, 1
  %v187 = vmax.f32 %v185, %v186
  %v188 = vsel %vm180, %v169, -inf
  %v189 = vrot.slane %v188, 4
  %v190 = vmax.f32 %v188, %v189
  %v191 = vrot.slane %v190, 2
  %v192 = vmax.f32 %v190, %v191
  %v193 = vrot.slane %v192, 1
  %v194 = vmax.f32 %v192, %v193
  %v195 = vsel %vm180, %v174, -inf
  %v196 = vrot.slane %v195, 4
  %v197 = vmax.f32 %v195, %v196
  %v198 = vrot.slane %v197, 2
  %v199 = vmax.f32 %v197, %v198
  %v200 = vrot.slane %v199, 1
  %v201 = vmax.f32 %v199, %v200
  %v202 = vsel %vm180, %v177, -inf
  %v203 = vrot.slane %v202, 4
  %v204 = vmax.f32 %v202, %v203
  %v205 = vrot.slane %v204, 2
  %v206 = vmax.f32 %v204, %v205
  %v207 = vrot.slane %v206, 1
  %v208 = vmax.f32 %v206, %v207
  %v209 = vsub.f32 %v166, %v187
  %v210 = vsub.f32 %v169, %v194
  %v211 = vsub.f32 %v174, %v201
  %v212 = vsub.f32 %v177, %v208
  %v213 = vmul.f32 %v209, 1.442695
  %v214 = vpow.pop %v213
  %v215 = vmul.f32 %v210, 1.442695
  %v216 = vpow.pop %v215
  %v217 = vmul.f32 %v211, 1.442695
  %v218 = vpow.pop %v217
  %v219 = vmul.f32 %v212, 1.442695
  %v220 = vpow.pop %v219
  %v221 = vsel %vm180, %v214, 0.0
  %v222 = vrot.slane %v221, 4
  %v223 = vadd.f32 %v221, %v222
  %v224 = vrot.slane %v223, 2
  %v225 = vadd.f32 %v223, %v224
  %v226 = vrot.slane %v225, 1
  %v227 = vadd.f32 %v225, %v226
  %v228 = vsel %vm180, %v216, 0.0
  %v229 = vrot.slane %v228, 4
  %v230 = vadd.f32 %v228, %v229
  %v231 = vrot.slane %v230, 2
  %v232 = vadd.f32 %v230, %v231
  %v233 = vrot.slane %v232, 1
  %v234 = vadd.f32 %v232, %v233
  %v235 = vsel %vm180, %v218, 0.0
  %v236 = vrot.slane %v235, 4
  %v237 = vadd.f32 %v235, %v236
  %v238 = vrot.slane %v237, 2
  %v239 = vadd.f32 %v237, %v238
  %v240 = vrot.slane %v239, 1
  %v241 = vadd.f32 %v239, %v240
  %v242 = vsel %vm180, %v220, 0.0
  %v243 = vrot.slane %v242, 4
  %v244 = vadd.f32 %v242, %v243
  %v245 = vrot.slane %v244, 2
  %v246 = vadd.f32 %v244, %v245
  %v247 = vrot.slane %v246, 1
  %v248 = vadd.f32 %v246, %v247
  %v249 = vrcp.pop %v227
  %v250 = vmul.f32 1.0, %v249
  %v251 = vrcp.pop %v234
  %v252 = vmul.f32 1.0, %v251
  %v253 = vrcp.pop %v241
  %v254 = vmul.f32 1.0, %v253
  %v255 = vrcp.pop %v248
  %v256 = vmul.f32 1.0, %v255
  %258 = vset.pattern.permute.xlu0 0
  %259 = vperm.xlu0 %258, %v214
  %v260 = vpop.permute.xlu0 %259
  %263 = vset.pattern.permute.xlu0 0
  %264 = vperm.xlu0 %263, %v216
  %v265 = vpop.permute.xlu0 %264
  %268 = vset.pattern.permute.xlu0 0
  %269 = vperm.xlu0 %268, %v218
  %v270 = vpop.permute.xlu0 %269
  %273 = vset.pattern.permute.xlu0 0
  %274 = vperm.xlu0 %273, %v220
  %v275 = vpop.permute.xlu0 %274
  %v277 = vmul.f32 %v260, %v103
  %v278 = vmul.f32 %v265, %v104
  %v279 = vmul.f32 %v270, %v105
  %v280 = vmul.f32 %v275, %v106
  %v281 = vsel %vm47, %v277, 0.0
  %v282 = vrot.slane %v281, 4
  %v283 = vadd.f32 %v281, %v282
  %v284 = vrot.slane %v283, 2
  %v285 = vadd.f32 %v283, %v284
  %v286 = vrot.slane %v285, 1
  %v287 = vadd.f32 %v285, %v286
  %v288 = vsel %vm47, %v278, 0.0
  %v289 = vrot.slane %v288, 4
  %v290 = vadd.f32 %v288, %v289
  %v291 = vrot.slane %v290, 2
  %v292 = vadd.f32 %v290, %v291
  %v293 = vrot.slane %v292, 1
  %v294 = vadd.f32 %v292, %v293
  %v295 = vsel %vm47, %v279, 0.0
  %v296 = vrot.slane %v295, 4
  %v297 = vadd.f32 %v295, %v296
  %v298 = vrot.slane %v297, 2
  %v299 = vadd.f32 %v297, %v298
  %v300 = vrot.slane %v299, 1
  %v301 = vadd.f32 %v299, %v300
  %v302 = vsel %vm47, %v280, 0.0
  %v303 = vrot.slane %v302, 4
  %v304 = vadd.f32 %v302, %v303
  %v305 = vrot.slane %v304, 2
  %v306 = vadd.f32 %v304, %v305
  %v307 = vrot.slane %v306, 1
  %v308 = vadd.f32 %v306, %v307
  %310 = vset.pattern.permute.xlu0 0
  %311 = vperm.xlu0 %310, %v250
  %v312 = vpop.permute.xlu0 %311
  %315 = vset.pattern.permute.xlu0 0
  %316 = vperm.xlu0 %315, %v252
  %v317 = vpop.permute.xlu0 %316
  %320 = vset.pattern.permute.xlu0 0
  %321 = vperm.xlu0 %320, %v254
  %v322 = vpop.permute.xlu0 %321
  %325 = vset.pattern.permute.xlu0 0
  %326 = vperm.xlu0 %325, %v256
  %v327 = vpop.permute.xlu0 %326
  %v329 = vmul.f32 %v287, %v312
  %v330 = vmul.f32 %v294, %v317
  %v331 = vmul.f32 %v301, %v322
  %v332 = vmul.f32 %v308, %v327
  %vm337 = vcmask 1041409
  %v338 = vsel %vm337, %v330, %v329
  %vm339 = vcmask 1042434
  %v340 = vsel %vm339, %v331, %v338
  %vm341 = vcmask 1043459
  %v342 = vsel %vm341, %v332, %v340
  %vm344 = vcmask 257024
  %345 = vst.msk [vmem:[%s4] sm:$0xf] %vm344, %v342
  %346 = vset.pattern.permute.xlu0 1
  %347 = vperm.xlu0 %346, %v214
  %v348 = vpop.permute.xlu0 %347
  %350 = vset.pattern.permute.xlu0 1
  %351 = vperm.xlu0 %350, %v216
  %v352 = vpop.permute.xlu0 %351
  %354 = vset.pattern.permute.xlu0 1
  %355 = vperm.xlu0 %354, %v218
  %v356 = vpop.permute.xlu0 %355
  %358 = vset.pattern.permute.xlu0 1
  %359 = vperm.xlu0 %358, %v220
  %v360 = vpop.permute.xlu0 %359
  %v362 = vmul.f32 %v348, %v103
  %v363 = vmul.f32 %v352, %v104
  %v364 = vmul.f32 %v356, %v105
  %v365 = vmul.f32 %v360, %v106
  %v366 = vsel %vm47, %v362, 0.0
  %v367 = vrot.slane %v366, 4
  %v368 = vadd.f32 %v366, %v367
  %v369 = vrot.slane %v368, 2
  %v370 = vadd.f32 %v368, %v369
  %v371 = vrot.slane %v370, 1
  %v372 = vadd.f32 %v370, %v371
  %v373 = vsel %vm47, %v363, 0.0
  %v374 = vrot.slane %v373, 4
  %v375 = vadd.f32 %v373, %v374
  %v376 = vrot.slane %v375, 2
  %v377 = vadd.f32 %v375, %v376
  %v378 = vrot.slane %v377, 1
  %v379 = vadd.f32 %v377, %v378
  %v380 = vsel %vm47, %v364, 0.0
  %v381 = vrot.slane %v380, 4
  %v382 = vadd.f32 %v380, %v381
  %v383 = vrot.slane %v382, 2
  %v384 = vadd.f32 %v382, %v383
  %v385 = vrot.slane %v384, 1
  %v386 = vadd.f32 %v384, %v385
  %v387 = vsel %vm47, %v365, 0.0
  %v388 = vrot.slane %v387, 4
  %v389 = vadd.f32 %v387, %v388
  %v390 = vrot.slane %v389, 2
  %v391 = vadd.f32 %v389, %v390
  %v392 = vrot.slane %v391, 1
  %v393 = vadd.f32 %v391, %v392
  %394 = vset.pattern.permute.xlu0 1
  %395 = vperm.xlu0 %394, %v250
  %v396 = vpop.permute.xlu0 %395
  %398 = vset.pattern.permute.xlu0 1
  %399 = vperm.xlu0 %398, %v252
  %v400 = vpop.permute.xlu0 %399
  %402 = vset.pattern.permute.xlu0 1
  %403 = vperm.xlu0 %402, %v254
  %v404 = vpop.permute.xlu0 %403
  %406 = vset.pattern.permute.xlu0 1
  %407 = vperm.xlu0 %406, %v256
  %v408 = vpop.permute.xlu0 %407
  %v410 = vmul.f32 %v372, %v396
  %v411 = vmul.f32 %v379, %v400
  %v412 = vmul.f32 %v386, %v404
  %v413 = vmul.f32 %v393, %v408
  %v418 = vsel %vm337, %v411, %v410
  %v419 = vsel %vm339, %v412, %v418
  %v420 = vsel %vm341, %v413, %v419
  %421 = vrot.lane.b32.xlu0 %v420, 32
  %v422 = vpop.permute.xlu0 %421
  %vm424 = vcmask 519424
  %425 = vst.msk [vmem:[%s4] sm:$0xf] %vm424, %v422
  %426 = vset.pattern.permute.xlu0 2
  %427 = vperm.xlu0 %426, %v214
  %v428 = vpop.permute.xlu0 %427
  %430 = vset.pattern.permute.xlu0 2
  %431 = vperm.xlu0 %430, %v216
  %v432 = vpop.permute.xlu0 %431
  %434 = vset.pattern.permute.xlu0 2
  %435 = vperm.xlu0 %434, %v218
  %v436 = vpop.permute.xlu0 %435
  %438 = vset.pattern.permute.xlu0 2
  %439 = vperm.xlu0 %438, %v220
  %v440 = vpop.permute.xlu0 %439
  %v442 = vmul.f32 %v428, %v103
  %v443 = vmul.f32 %v432, %v104
  %v444 = vmul.f32 %v436, %v105
  %v445 = vmul.f32 %v440, %v106
  %v446 = vsel %vm47, %v442, 0.0
  %v447 = vrot.slane %v446, 4
  %v448 = vadd.f32 %v446, %v447
  %v449 = vrot.slane %v448, 2
  %v450 = vadd.f32 %v448, %v449
  %v451 = vrot.slane %v450, 1
  %v452 = vadd.f32 %v450, %v451
  %v453 = vsel %vm47, %v443, 0.0
  %v454 = vrot.slane %v453, 4
  %v455 = vadd.f32 %v453, %v454
  %v456 = vrot.slane %v455, 2
  %v457 = vadd.f32 %v455, %v456
  %v458 = vrot.slane %v457, 1
  %v459 = vadd.f32 %v457, %v458
  %v460 = vsel %vm47, %v444, 0.0
  %v461 = vrot.slane %v460, 4
  %v462 = vadd.f32 %v460, %v461
  %v463 = vrot.slane %v462, 2
  %v464 = vadd.f32 %v462, %v463
  %v465 = vrot.slane %v464, 1
  %v466 = vadd.f32 %v464, %v465
  %v467 = vsel %vm47, %v445, 0.0
  %v468 = vrot.slane %v467, 4
  %v469 = vadd.f32 %v467, %v468
  %v470 = vrot.slane %v469, 2
  %v471 = vadd.f32 %v469, %v470
  %v472 = vrot.slane %v471, 1
  %v473 = vadd.f32 %v471, %v472
  %474 = vset.pattern.permute.xlu0 2
  %475 = vperm.xlu0 %474, %v250
  %v476 = vpop.permute.xlu0 %475
  %478 = vset.pattern.permute.xlu0 2
  %479 = vperm.xlu0 %478, %v252
  %v480 = vpop.permute.xlu0 %479
  %482 = vset.pattern.permute.xlu0 2
  %483 = vperm.xlu0 %482, %v254
  %v484 = vpop.permute.xlu0 %483
  %486 = vset.pattern.permute.xlu0 2
  %487 = vperm.xlu0 %486, %v256
  %v488 = vpop.permute.xlu0 %487
  %v490 = vmul.f32 %v452, %v476
  %v491 = vmul.f32 %v459, %v480
  %v492 = vmul.f32 %v466, %v484
  %v493 = vmul.f32 %v473, %v488
  %v498 = vsel %vm337, %v491, %v490
  %v499 = vsel %vm339, %v492, %v498
  %v500 = vsel %vm341, %v493, %v499
  %501 = vrot.lane.b32.xlu0 %v500, 64
  %v502 = vpop.permute.xlu0 %501
  %vm504 = vcmask 781824
  %505 = vst.msk [vmem:[%s4] sm:$0xf] %vm504, %v502
  %506 = vset.pattern.permute.xlu0 3
  %507 = vperm.xlu0 %506, %v214
  %v508 = vpop.permute.xlu0 %507
  %510 = vset.pattern.permute.xlu0 3
  %511 = vperm.xlu0 %510, %v216
  %v512 = vpop.permute.xlu0 %511
  %514 = vset.pattern.permute.xlu0 3
  %515 = vperm.xlu0 %514, %v218
  %v516 = vpop.permute.xlu0 %515
  %518 = vset.pattern.permute.xlu0 3
  %519 = vperm.xlu0 %518, %v220
  %v520 = vpop.permute.xlu0 %519
  %v522 = vmul.f32 %v508, %v103
  %v523 = vmul.f32 %v512, %v104
  %v524 = vmul.f32 %v516, %v105
  %v525 = vmul.f32 %v520, %v106
  %v526 = vsel %vm47, %v522, 0.0
  %v527 = vrot.slane %v526, 4
  %v528 = vadd.f32 %v526, %v527
  %v529 = vrot.slane %v528, 2
  %v530 = vadd.f32 %v528, %v529
  %v531 = vrot.slane %v530, 1
  %v532 = vadd.f32 %v530, %v531
  %v533 = vsel %vm47, %v523, 0.0
  %v534 = vrot.slane %v533, 4
  %v535 = vadd.f32 %v533, %v534
  %v536 = vrot.slane %v535, 2
  %v537 = vadd.f32 %v535, %v536
  %v538 = vrot.slane %v537, 1
  %v539 = vadd.f32 %v537, %v538
  %v540 = vsel %vm47, %v524, 0.0
  %v541 = vrot.slane %v540, 4
  %v542 = vadd.f32 %v540, %v541
  %v543 = vrot.slane %v542, 2
  %v544 = vadd.f32 %v542, %v543
  %v545 = vrot.slane %v544, 1
  %v546 = vadd.f32 %v544, %v545
  %v547 = vsel %vm47, %v525, 0.0
  %v548 = vrot.slane %v547, 4
  %v549 = vadd.f32 %v547, %v548
  %v550 = vrot.slane %v549, 2
  %v551 = vadd.f32 %v549, %v550
  %v552 = vrot.slane %v551, 1
  %v553 = vadd.f32 %v551, %v552
  %554 = vset.pattern.permute.xlu0 3
  %555 = vperm.xlu0 %554, %v250
  %v556 = vpop.permute.xlu0 %555
  %558 = vset.pattern.permute.xlu0 3
  %559 = vperm.xlu0 %558, %v252
  %v560 = vpop.permute.xlu0 %559
  %562 = vset.pattern.permute.xlu0 3
  %563 = vperm.xlu0 %562, %v254
  %v564 = vpop.permute.xlu0 %563
  %566 = vset.pattern.permute.xlu0 3
  %567 = vperm.xlu0 %566, %v256
  %v568 = vpop.permute.xlu0 %567
  %v570 = vmul.f32 %v532, %v556
  %v571 = vmul.f32 %v539, %v560
  %v572 = vmul.f32 %v546, %v564
  %v573 = vmul.f32 %v553, %v568
  %v578 = vsel %vm337, %v571, %v570
  %v579 = vsel %vm339, %v572, %v578
  %v580 = vsel %vm341, %v573, %v579
  %581 = vrot.lane.b32.xlu0 %v580, 96
  %v582 = vpop.permute.xlu0 %581
  %vm584 = vcmask 1044224
  %585 = vst.msk [vmem:[%s4] sm:$0xf] %vm584, %v582
  // Predicated region
  $region18: #{context_forward.1} parent=0 // pred_check
    _
  $region19: #{context_forward.1} parent=0 // pred_check_branch
    %587 = sbr.rel (0) target = $region21
  $region20: #{context_forward.1} parent=0 // pred_region
    _
  $region21: #{context_forward.1} parent=0 // pred_fallthru
    _
  // Predicated region
  $region22: #{context_forward.1} parent=0 // pred_check
    _
  $region23: #{context_forward.1} parent=0 // pred_check_branch
    %589 = sbr.rel (0) target = $region25
  $region24: #{context_forward.1} parent=0 // pred_region
    _
  $region25: #{context_forward.1} parent=0 // pred_fallthru
    _

</llo_original>
